<compile_context>
chip_gen: v6e
topology: v6e:2x2x1
jax: 0.10.0
libtpu: 0.0.40
codegen_flags: <defaults>
</compile_context>

<pallas_src>
import functools
import math
from typing import NamedTuple, Optional

import jax
import jax.numpy as jnp
from jax.experimental import pallas as pl
from jax.experimental.pallas import tpu as pltpu


def _round_up(x: int, m: int) -> int:
    return (x + m - 1) // m * m


@functools.lru_cache(maxsize=1)
def _default_config():
    """Per-generation tile / VMEM-limit defaults."""
    try:
        kind = jax.devices()[0].device_kind.lower()
    except Exception:  # pragma: no cover
        kind = ""
    if "v7" in kind:
        # 64 MiB physical VMEM per TC: keep headroom for double-buffering.
        return dict(tm=512, tn=2048, tk=1024, vmem_limit_bytes=48 << 20)
    if "v5 lite" in kind or "v5e" in kind or "v5lite" in kind:
        # 197 TF/s bf16 + ~820 GB/s HBM: modest tiles, raise the 16 MiB default.
        return dict(tm=256, tn=1024, tk=1024, vmem_limit_bytes=64 << 20)
    # v6e / default
    return dict(tm=512, tn=2048, tk=1024, vmem_limit_bytes=64 << 20)


class FinalTokenParams(NamedTuple):
    w_t: jax.Array    # (H_pad, V_pad), compute dtype (bf16 by default)
    bias: jax.Array   # (1, V_pad), float32
    vocab_size: int
    hidden_dim: int
    tn: int
    tk: int


def prepare_final_token_params(weight, bias, *, tn: Optional[int] = None,
                               tk: Optional[int] = None,
                               param_dtype=jnp.bfloat16) -> FinalTokenParams:
    """One-time parameter setup: pad to tile multiples, transpose to (H, V), cast.

    weight: (V, H) PyTorch nn.Linear layout; bias: (V,).
    """
    V, H = weight.shape
    cfg = _default_config()
    tn = cfg["tn"] if tn is None else tn
    tk = cfg["tk"] if tk is None else tk
    tn = min(tn, _round_up(V, 128))
    tk = min(tk, _round_up(H, 128))
    V_pad = _round_up(V, tn)
    H_pad = _round_up(H, tk)

    w = weight
    if (V_pad, H_pad) != (V, H):
        w = jnp.pad(w, ((0, V_pad - V), (0, H_pad - H)))
    w_t = jnp.asarray(w.T, dtype=param_dtype)          # (H_pad, V_pad), one-time copy

    b2d = bias.astype(jnp.float32).reshape(1, V)
    if V_pad != V:
        b2d = jnp.pad(b2d, ((0, 0), (0, V_pad - V)))

    return FinalTokenParams(w_t=w_t, bias=b2d, vocab_size=V, hidden_dim=H,
                            tn=tn, tk=tk)


def _lm_head_kernel_noacc(x_ref, w_ref, b_ref, o_ref):
    """Single-k-tile path: no accumulator scratch, direct dot + bias + store."""
    acc = jnp.dot(x_ref[...], w_ref[...], preferred_element_type=jnp.float32)
    o_ref[...] = (acc + b_ref[...]).astype(o_ref.dtype)


def _lm_head_kernel_acc(x_ref, w_ref, b_ref, o_ref, acc_ref):
    """Multi-k-tile path: f32 VMEM accumulator across the reduction axis."""
    k = pl.program_id(2)

    @pl.when(k == 0)
    def _():
        acc_ref[...] = jnp.zeros_like(acc_ref)

    acc_ref[...] += jnp.dot(x_ref[...], w_ref[...],
                            preferred_element_type=jnp.float32)

    @pl.when(k == pl.num_programs(2) - 1)
    def _():
        o_ref[...] = (acc_ref[...] + b_ref[...]).astype(o_ref.dtype)


@functools.partial(
    jax.jit,
    static_argnames=("vocab_size", "tm", "tn", "tk", "out_dtype",
                     "vmem_limit_bytes"))
def _lm_head_impl(x2d, w_t, b2d, *, vocab_size, tm, tn, tk, out_dtype,
                  vmem_limit_bytes):
    M, H = x2d.shape
    H_pad, V_pad = w_t.shape
    M_pad = _round_up(M, tm)

    # Activations: cast to the prepared weight's compute dtype (bf16 by default).
    x2d = x2d.astype(w_t.dtype)
    if (M_pad, H_pad) != (M, H):
        x2d = jnp.pad(x2d, ((0, M_pad - M), (0, H_pad - H)))

    grid_m, grid_n, grid_k = M_pad // tm, V_pad // tn, H_pad // tk

    if grid_m >= grid_n:
        grid = (grid_m, grid_n, grid_k)
        x_map = lambda i, j, k: (i, k)
        w_map = lambda i, j, k: (k, j)
        b_map = lambda i, j, k: (0, j)
        o_map = lambda i, j, k: (i, j)
    else:
        # Decode-like (few M tiles): put the vocab axis first so the large
        # parallel axis megacore-shards on v7x.
        grid = (grid_n, grid_m, grid_k)
        x_map = lambda j, i, k: (i, k)
        w_map = lambda j, i, k: (k, j)
        b_map = lambda j, i, k: (0, j)
        o_map = lambda j, i, k: (i, j)

    if grid_k == 1:
        kernel, scratch = _lm_head_kernel_noacc, []
    else:
        kernel, scratch = _lm_head_kernel_acc, [pltpu.VMEM((tm, tn), jnp.float32)]

    out = pl.pallas_call(
        kernel,
        out_shape=jax.ShapeDtypeStruct((M_pad, V_pad), out_dtype),
        grid_spec=pltpu.PrefetchScalarGridSpec(
            num_scalar_prefetch=0,
            grid=grid,
            in_specs=[
                pl.BlockSpec((tm, tk), x_map),   # activations (M, H)
                pl.BlockSpec((tk, tn), w_map),   # weight, pre-transposed (H, V)
                pl.BlockSpec((1, tn), b_map),    # bias (1, V), f32
            ],
            out_specs=pl.BlockSpec((tm, tn), o_map),
            scratch_shapes=scratch,
        ),
        compiler_params=pltpu.CompilerParams(
            dimension_semantics=("parallel", "parallel", "arbitrary"),
            vmem_limit_bytes=vmem_limit_bytes),
    )(x2d, w_t, b2d)

    return out[:M, :vocab_size]


def final_token_forward(params: FinalTokenParams, x, *, tm: Optional[int] = None,
                        out_dtype=jnp.float32,
                        vmem_limit_bytes: Optional[int] = None):
    """y = x @ weight.T + bias using pre-prepared (padded/transposed/bf16) params."""
    *lead, H = x.shape
    assert H == params.hidden_dim, "hidden dim mismatch with prepared params"
    cfg = _default_config()
    tm = cfg["tm"] if tm is None else tm
    vmem_limit_bytes = (cfg["vmem_limit_bytes"] if vmem_limit_bytes is None
                        else vmem_limit_bytes)

    M = math.prod(lead) if lead else 1
    tm = min(tm, _round_up(M, 8))
    x2d = x.reshape(M, H)

    out = _lm_head_impl(x2d, params.w_t, params.bias,
                        vocab_size=params.vocab_size, tm=tm, tn=params.tn,
                        tk=params.tk, out_dtype=out_dtype,
                        vmem_limit_bytes=vmem_limit_bytes)
    return out.reshape(*lead, params.vocab_size)


def final_token_block(x, weight, bias, *, tm=None, tn=None, tk=None,
                      param_dtype=jnp.bfloat16, out_dtype=jnp.float32):
    """One-shot convenience wrapper (PyTorch nn.Linear semantics).

    In production, call prepare_final_token_params once at parameter setup and
    reuse the result across forward calls.
    """
    params = prepare_final_token_params(weight, bias, tn=tn, tk=tk,
                                        param_dtype=param_dtype)
    return final_token_forward(params, x, tm=tm, out_dtype=out_dtype)


if __name__ == "__main__":
    key = jax.random.PRNGKey(0)
    ks = jax.random.split(key, 6)

    def ref_bf16(x, w, b):
        # Reference matching the kernel's bf16-in / f32-accumulate numerics.
        xb = x.astype(jnp.bfloat16).astype(jnp.float32)
        wb = w.astype(jnp.bfloat16).astype(jnp.float32)
        return xb @ wb.T + b.astype(jnp.float32)

    # Case 1: module-consistent small shapes: batch=2, seq=8, hidden=32, vocab=128.
    B, S, H, V = 2, 8, 32, 128
    x = jax.random.normal(ks[0], (B, S, H), dtype=jnp.float32)
    weight = jax.random.normal(ks[1], (V, H), dtype=jnp.float32) * 0.02
    bias = jax.random.normal(ks[2], (V,), dtype=jnp.float32) * 0.01

    params = prepare_final_token_params(weight, bias)
    y = final_token_forward(params, x)
    jax.block_until_ready(y)
    assert y.shape == (B, S, V)
    assert y.dtype == jnp.float32
    assert jnp.allclose(y, ref_bf16(x, weight, bias), atol=5e-3, rtol=5e-3)

    # Case 2: ragged dims + small explicit tiles -> multi-tile grid with
    # k-axis accumulation and padded V/H edges.
    B2, S2, H2, V2 = 2, 20, 160, 300
    x2 = jax.random.normal(ks[3], (B2, S2, H2), dtype=jnp.float32)
    w2 = jax.random.normal(ks[4], (V2, H2), dtype=jnp.float32) * 0.02
    b2 = jax.random.normal(ks[5], (V2,), dtype=jnp.float32) * 0.01

    params2 = prepare_final_token_params(w2, b2, tn=128, tk=128)
    y2 = final_token_forward(params2, x2, tm=8)
    jax.block_until_ready(y2)
    assert y2.shape == (B2, S2, V2)
    assert jnp.allclose(y2, ref_bf16(x2, w2, b2), atol=5e-3, rtol=5e-3)

    # Case 3: decode-like (single M tile) -> exercises the vocab-leading grid
    # order used for megacore sharding on v7x.
    x3 = x2[:, :1, :]                      # (2, 1, 160)
    y3 = final_token_forward(params2, x3)
    jax.block_until_ready(y3)
    assert y3.shape == (B2, 1, V2)
    assert jnp.allclose(y3, ref_bf16(x3, w2, b2), atol=5e-3, rtol=5e-3)

    print("KERNEL_OK")
</pallas_src>

<mosaic_0001>
module attributes {stable_mosaic.version = 11 : i64} {
  func.func @_lm_head_kernel_noacc(%arg0: i32, %arg1: i32, %arg2: i32, %arg3: memref<16x128xbf16, #tpu.memory_space<vmem>>, %arg4: memref<128x128xbf16, #tpu.memory_space<vmem>>, %arg5: memref<1x128xf32, #tpu.memory_space<vmem>>, %arg6: memref<16x128xf32, #tpu.memory_space<vmem>>) attributes {dimension_semantics = [#tpu.dimension_semantics<parallel>, #tpu.dimension_semantics<parallel>, #tpu.dimension_semantics<arbitrary>], iteration_bounds = array<i64: 1, 1, 1>, scalar_prefetch = 0 : i64, scratch_operands = 0 : i64, tpu.core_type = #tpu.core_type<tc>, window_params = [{transform_indices = @transform_0, window_bounds = array<i64: 16, 128>}, {transform_indices = @transform_1, window_bounds = array<i64: 128, 128>}, {transform_indices = @transform_2, window_bounds = array<i64: 1, 128>}, {transform_indices = @transform_3, window_bounds = array<i64: 16, 128>}]} {
    %c0 = arith.constant 0 : index
    %c0_0 = arith.constant 0 : index
    %0 = vector.load %arg3[%c0, %c0_0] : memref<16x128xbf16, #tpu.memory_space<vmem>>, vector<16x128xbf16>
    %c0_1 = arith.constant 0 : index
    %c0_2 = arith.constant 0 : index
    %1 = vector.load %arg4[%c0_1, %c0_2] : memref<128x128xbf16, #tpu.memory_space<vmem>>, vector<128x128xbf16>
    %cst = arith.constant dense<0.000000e+00> : vector<16x128xf32>
    %2 = tpu.matmul %0, %1, %cst {dimension_numbers = #tpu.dot_dimension_numbers<[1], [0], [0], [1], [0, 0, 1, 1], [], []>} : vector<16x128xbf16>, vector<128x128xbf16>, vector<16x128xf32> -> vector<16x128xf32>
    %c0_3 = arith.constant 0 : index
    %c0_4 = arith.constant 0 : index
    %3 = vector.load %arg5[%c0_3, %c0_4] : memref<1x128xf32, #tpu.memory_space<vmem>>, vector<1x128xf32>
    %4 = vector.broadcast %3 : vector<1x128xf32> to vector<16x128xf32>
    %5 = arith.addf %2, %4 : vector<16x128xf32>
    %c0_5 = arith.constant 0 : index
    %c0_6 = arith.constant 0 : index
    %6 = vector.load %arg6[%c0_5, %c0_6] : memref<16x128xf32, #tpu.memory_space<vmem>>, vector<16x128xf32>
    tpu.vector_store %arg6[%c0_5, %c0_6], %5 {strides = array<i32>} : memref<16x128xf32, #tpu.memory_space<vmem>>, vector<16x128xf32>,
    return
  }
  func.func @transform_0(%arg0: i32, %arg1: i32, %arg2: i32) -> (i32, i32) {
    %c0_i32 = arith.constant 0 : i32
    return %arg0, %arg2 : i32, i32
  }
  func.func @transform_1(%arg0: i32, %arg1: i32, %arg2: i32) -> (i32, i32) {
    %c0_i32 = arith.constant 0 : i32
    return %arg2, %arg1 : i32, i32
  }
  func.func @transform_2(%arg0: i32, %arg1: i32, %arg2: i32) -> (i32, i32) {
    %c0_i32 = arith.constant 0 : i32
    %c0_i32_0 = arith.constant 0 : i32
    return %c0_i32, %arg1 : i32, i32
  }
  func.func @transform_3(%arg0: i32, %arg1: i32, %arg2: i32) -> (i32, i32) {
    %c0_i32 = arith.constant 0 : i32
    return %arg0, %arg1 : i32, i32
  }
}

</mosaic_0001>

<llo_original>
// kernel: _lm_head_impl.1
$region0: #{_lm_head_impl.1}
  #allocation0 [shape = 'u32[]', space=smem, size = 0x4, offset = 0x4, fixed_abs, tag = 'smem constant byte address 0x4 - core index']
  #allocation1 [shape = 'u32[144,128]{1,0:T(1,128)}', space=vmem, size = 0x12000, scoped, tag = 'internal scratch']
  %s0 = inlined_call_operand.vmem [shape: bf16[16,128], index: 0, kind: input, shape index: {}]
  %s1 = inlined_call_operand.hbm [shape: bf16[128,128], index: 1, kind: input, shape index: {}]
  %s2 = inlined_call_operand.vmem [shape: f32[1,128], index: 2, kind: input, shape index: {}]
  %s3 = inlined_call_operand.hbm [shape: f32[16,128], index: 3, kind: output, shape index: {}]
  %s4 = sld [smem:[#allocation0]]
  $region26: #{_lm_head_impl.1} parent=0
    _
  %s6 = ssub.s32 1, %s4
  %s7 = scalar_select 0, %s6, %s4
  $region1: #{_lm_head_impl.1} parent=0
    #allocation2 [shape = 'u8[32768]{0}', space=vmem, size = 0x8000, scoped, tag = 'input window, operand 1, single buffered']
    #allocation3 [shape = 's32[1]{0}', space=sflag, size = 0x4, scoped, tag = 'scoped memory for _lm_head_impl.1']
    #allocation4 [shape = 's32[1]{0}', space=sflag, size = 0x4, scoped, tag = 'scoped memory for _lm_head_impl.1']
    #allocation5 [shape = 'u8[8192]{0}', space=vmem, size = 0x2000, scoped, tag = 'output window, operand 0, single buffered']
    %8 = vsyncpa [#allocation3], 0
    %9 = vsyncpa [#allocation4], 0
    // Predicated region
    $region2: #{_lm_head_impl.1} parent=1 // pred_check
      _
    $region3: #{_lm_head_impl.1} parent=1 // pred_check_branch
      %11 = sbr.rel (0) target = $region5
    $region4: #{_lm_head_impl.1} parent=1 // pred_region
      _
    $region5: #{_lm_head_impl.1} parent=1 // pred_fallthru
      _
    // Predicated region
    $region6: #{_lm_head_impl.1} parent=1 // pred_check
      _
    $region7: #{_lm_head_impl.1} parent=1 // pred_check_branch
      %13 = sbr.rel (0) target = $region9
    $region8: #{_lm_head_impl.1} parent=1 // pred_region
      %s15 = ssub.s32 1024, 1024
      %16 = vsyncadd [#allocation3], %s15
      %s17 = sshll.u32 [#allocation2], 4
      %s18 = int_to_ptr.vmem [resolvable:$true] %s17
      %23 = dma.hbm_to_vmem [thread:$0]  %s1, 1024, %s18, [#allocation3], 64, 64, 4
    $region9: #{_lm_head_impl.1} parent=1 // pred_fallthru
      _
    // Predicated region
    $region10: #{_lm_head_impl.1} parent=1 // pred_check
      _
    $region11: #{_lm_head_impl.1} parent=1 // pred_check_branch
      %25 = sbr.rel (0) target = $region13
    $region12: #{_lm_head_impl.1} parent=1 // pred_region
      _
    $region13: #{_lm_head_impl.1} parent=1 // pred_fallthru
      _
    // Predicated region
    $region14: #{_lm_head_impl.1} parent=1 // pred_check
      _
    $region15: #{_lm_head_impl.1} parent=1 // pred_check_branch
      %27 = sbr.rel (0) target = $region17
    $region16: #{_lm_head_impl.1} parent=1 // pred_region
      %28 = dma.done [#allocation3], 1024
    $region17: #{_lm_head_impl.1} parent=1 // pred_fallthru
      _
    %v30 = vld [vmem:[%s0] sm:$0xf]
    %v31 = vld [vmem:[%s0 + $0x4] sm:$0xf]
    %v32 = vld [vmem:[#allocation2] sm:$0xf]
    %v33 = vld [vmem:[#allocation2 + $0x4] sm:$0xf]
    %v34 = vld [vmem:[#allocation2 + $0x8] sm:$0xf]
    %v35 = vld [vmem:[#allocation2 + $0xc] sm:$0xf]
    %v36 = vld [vmem:[#allocation2 + $0x10] sm:$0xf]
    %v37 = vld [vmem:[#allocation2 + $0x14] sm:$0xf]
    %v38 = vld [vmem:[#allocation2 + $0x18] sm:$0xf]
    %v39 = vld [vmem:[#allocation2 + $0x1c] sm:$0xf]
    %v40 = vld [vmem:[#allocation2 + $0x20] sm:$0xf]
    %v41 = vld [vmem:[#allocation2 + $0x24] sm:$0xf]
    %v42 = vld [vmem:[#allocation2 + $0x28] sm:$0xf]
    %v43 = vld [vmem:[#allocation2 + $0x2c] sm:$0xf]
    %v44 = vld [vmem:[#allocation2 + $0x30] sm:$0xf]
    %v45 = vld [vmem:[#allocation2 + $0x34] sm:$0xf]
    %v46 = vld [vmem:[#allocation2 + $0x38] sm:$0xf]
    %v47 = vld [vmem:[#allocation2 + $0x3c] sm:$0xf]
    %v48 = vld [vmem:[%s2] sm:$0x1]
    %v50 = vlaneseq
    %v51 = vshrl.u32 %v50, 7
    %v52 = vsub.s32 0, %v51
    %v53 = vrot.slane %v48, %v52
    %v57 = vunpack.c.l.b16 %v30
    %v58 = vunpack.c.l.b16 %v31
    %v59 = vpack.c.b16 %v58, %v57
    %v77 = vunpack.c.l.b16 %v32
    %v78 = vunpack.c.l.b16 %v33
    %v79 = vunpack.c.l.b16 %v34
    %v80 = vunpack.c.l.b16 %v35
    %v81 = vunpack.c.l.b16 %v36
    %v82 = vunpack.c.l.b16 %v37
    %v83 = vunpack.c.l.b16 %v38
    %v84 = vunpack.c.l.b16 %v39
    %v85 = vunpack.c.l.b16 %v40
    %v86 = vunpack.c.l.b16 %v41
    %v87 = vunpack.c.l.b16 %v42
    %v88 = vunpack.c.l.b16 %v43
    %v89 = vunpack.c.l.b16 %v44
    %v90 = vunpack.c.l.b16 %v45
    %v91 = vunpack.c.l.b16 %v46
    %v92 = vunpack.c.l.b16 %v47
    %v93 = vpack.c.b16 %v78, %v77
    %v94 = vpack.c.b16 %v80, %v79
    %v95 = vpack.c.b16 %v82, %v81
    %v96 = vpack.c.b16 %v84, %v83
    %v97 = vpack.c.b16 %v86, %v85
    %v98 = vpack.c.b16 %v88, %v87
    %v99 = vpack.c.b16 %v90, %v89
    %v100 = vpack.c.b16 %v92, %v91
    %109 = vmatprep.subr.bf16.mxu0 0
    %110 = vmatpush1.bf16.msra.mxu0 %v100
    %111 = vmatprep.subr.bf16.mxu0 0
    %112 = vmatpush1.bf16.msra.mxu0 %v99
    %113 = vmatprep.subr.bf16.mxu0 0
    %114 = vmatpush1.bf16.msra.mxu0 %v98
    %115 = vmatprep.subr.bf16.mxu0 0
    %116 = vmatpush1.bf16.msra.mxu0 %v97
    %117 = vmatprep.subr.bf16.mxu0 0
    %118 = vmatpush1.bf16.msra.mxu0 %v96
    %119 = vmatprep.subr.bf16.mxu0 0
    %120 = vmatpush1.bf16.msra.mxu0 %v95
    %121 = vmatprep.subr.bf16.mxu0 0
    %122 = vmatpush1.bf16.msra.mxu0 %v94
    %123 = vmatprep.subr.bf16.mxu0 0
    %124 = vmatpush1.bf16.msra.mxu0 %v93
    %125 = vmatprep.subr.bf16.mxu0 0
    %126 = vmatpush2.bf16.msra.mxu0 0
    %127 = vmatprep.subr.bf16.mxu0 0
    %128 = vmatpush2.bf16.msra.mxu0 0
    %129 = vmatprep.subr.bf16.mxu0 0
    %130 = vmatpush2.bf16.msra.mxu0 0
    %131 = vmatprep.subr.bf16.mxu0 0
    %132 = vmatpush2.bf16.msra.mxu0 0
    %133 = vmatprep.subr.bf16.mxu0 0
    %134 = vmatpush2.bf16.msra.mxu0 0
    %135 = vmatprep.subr.bf16.mxu0 0
    %136 = vmatpush2.bf16.msra.mxu0 0
    %137 = vmatprep.subr.bf16.mxu0 0
    %138 = vmatpush2.bf16.msra.mxu0 0
    %139 = vmatprep.subr.bf16.mxu0 0
    %140 = vmatpush2.bf16.msra.mxu0 0
    %141 = vmatprep.mubr.bf16.mxu0 0
    %142 = vmatmul.mubr.bf16.gmra.mxu0 %v59
    %v143 = vpop.f32.mrf.mxu0
    %v144 = vadd.f32 %v53, %v143
    %v145 = vpop.f32.mrf.mxu0
    %v146 = vpop.f32.mrf.mxu0
    %v147 = vadd.f32 %v53, %v146
    %v148 = vpop.f32.mrf.mxu0
    %149 = vdwg.mxu0
    %150 = vst [vmem:[#allocation5] sm:$0xff] %v144
    %151 = vst [vmem:[#allocation5 + $0x8] sm:$0xff] %v147
    // Predicated region
    $region18: #{_lm_head_impl.1} parent=1 // pred_check
      _
    $region19: #{_lm_head_impl.1} parent=1 // pred_check_branch
      %153 = sbr.rel (0) target = $region21
    $region20: #{_lm_head_impl.1} parent=1 // pred_region
      %s155 = ssub.s32 256, 256
      %156 = vsyncadd [#allocation4], %s155
      %s157 = sshll.u32 [#allocation5], 4
      %s158 = int_to_ptr.vmem [resolvable:$true] %s157
      %163 = dma.vmem_to_hbm [thread:$0]  %s158, 256, %s3, [#allocation4], 128, 128, 8
    $region21: #{_lm_head_impl.1} parent=1 // pred_fallthru
      _
    // Predicated region
    $region22: #{_lm_head_impl.1} parent=1 // pred_check
      _
    $region23: #{_lm_head_impl.1} parent=1 // pred_check_branch
      %165 = sbr.rel (0) target = $region25
    $region24: #{_lm_head_impl.1} parent=1 // pred_region
      %166 = dma.done [#allocation4], 256
    $region25: #{_lm_head_impl.1} parent=1 // pred_fallthru
      _
    %167 = vsyncpa [#allocation3], 1
    %168 = vsyncpa [#allocation4], 1

</llo_original>
